<compile_context>
chip_gen: v7x
topology: tpu7x:2x2x1
jax: 0.10.0
libtpu: 0.0.40
codegen_flags: <defaults>
</compile_context>

<pallas_src>
import jax
import jax.numpy as jnp
from jax.experimental import pallas as pl
from jax.experimental.pallas import tpu as pltpu

LANE = 128                      # padded lane width of the fused input row
H1 = 256                        # hidden dim of each input projection
H2_PAD = 128                    # padded middle dim (real 64)
N_MID = 64
N_OUT = 16
D_PIECE, D_BOARD, D_PIECES = 4, 80, 16
D_IN = D_PIECE + D_BOARD + D_PIECES      # 100 real input lanes
BIAS_LANE = LANE - 1                     # lane 127 carries a constant 1.0
NEG_BIG = -1e30                          # baked softmax mask for pad lanes


def placenet_kernel(xin_ref, btop_ref, w1_ref, w2_ref, w3_ref, b23_ref, out_ref):
    # Fused first layer: one (1,128) @ (128,768) block-diagonal matmul computes
    # pieceIn, boardIn and piecesIn (biases included via the constant-1 lane).
    u = jnp.dot(xin_ref[...], w1_ref[...],
                preferred_element_type=jnp.float32)            # (1, 768)
    u = jnp.maximum(u, 0.0)                                    # ReLU all chunks
    z = u[:, 0:H1] + u[:, H1:2 * H1] + u[:, 2 * H1:3 * H1]     # (1, 256)

    b23 = b23_ref[...]                                         # (2, 128)
    # middle: (1,256) @ (256,128) (real 64 cols, rest zero) + bias, ReLU
    h = jnp.maximum(
        jnp.dot(z, w2_ref[...], preferred_element_type=jnp.float32) + b23[0:1, :],
        0.0)                                                   # (1, 128)
    # placeOut: (1,128) @ (128,128) (real 64x16, rest zero) + bias.
    # Bias pad lanes are -1e30 -> they never win the max and exp() -> 0,
    # so no iota / where masking is needed.
    logits = jnp.dot(h, w3_ref[...],
                     preferred_element_type=jnp.float32) + b23[1:2, :]  # (1, 128)

    m = jnp.max(logits, axis=1, keepdims=True)
    e = jnp.exp(logits - m)                                    # pad lanes == 0

    # softmax denominator cancels against the L1 normalize:
    #   softmax(l)*(1-btop) / ||softmax(l)*(1-btop)||_1
    #     == e*(1-btop) / sum(e*(1-btop))         (e >= 0, so no abs)
    legal = e[:, :N_OUT] * (1.0 - btop_ref[...])               # (1, 16)
    denom = jnp.maximum(jnp.sum(legal, axis=1, keepdims=True), 1e-12)
    out_ref[...] = legal * pl.reciprocal(denom, approx=True)   # EUP reciprocal


def init_params(key):
    """Deterministic init mirroring nn.Linear shapes; pack once for the kernel."""
    def lin(k, fan_in, fan_out):
        k1, k2 = jax.random.split(k)
        bound = 1.0 / jnp.sqrt(jnp.float32(fan_in))
        w = jax.random.uniform(k1, (fan_in, fan_out), jnp.float32, -bound, bound)
        b = jax.random.uniform(k2, (fan_out,), jnp.float32, -bound, bound)
        return w, b

    ks = jax.random.split(key, 5)
    wp, bp = lin(ks[0], D_PIECE, H1)    # pieceIn
    wb, bb = lin(ks[1], D_BOARD, H1)    # boardIn
    wq, bq = lin(ks[2], D_PIECES, H1)   # piecesIn
    wm, bm = lin(ks[3], H1, N_MID)      # middle
    wo, bo = lin(ks[4], N_MID, N_OUT)   # placeOut
    raw = dict(wp=wp, bp=bp, wb=wb, bb=bb, wq=wq, bq=bq,
               wm=wm, bm=bm, wo=wo, bo=bo)

    # ---- one-time packing (no per-call padding) --------------------------
    # W1: (128, 768) block-diagonal fused first layer; row 127 = biases.
    w1 = jnp.zeros((LANE, 3 * H1), jnp.float32)
    w1 = w1.at[0:D_PIECE, 0:H1].set(wp)
    w1 = w1.at[D_PIECE:D_PIECE + D_BOARD, H1:2 * H1].set(wb)
    w1 = w1.at[D_PIECE + D_BOARD:D_IN, 2 * H1:3 * H1].set(wq)
    w1 = w1.at[BIAS_LANE, 0:H1].set(bp)
    w1 = w1.at[BIAS_LANE, H1:2 * H1].set(bb)
    w1 = w1.at[BIAS_LANE, 2 * H1:3 * H1].set(bq)

    # W2: (256, 128) middle weight, zero-padded output columns.
    w2 = jnp.zeros((H1, H2_PAD), jnp.float32).at[:, 0:N_MID].set(wm)

    # W3: (128, 128) placeOut weight, zero-padded rows/columns.
    w3 = jnp.zeros((H2_PAD, H2_PAD), jnp.float32).at[0:N_MID, 0:N_OUT].set(wo)

    # B23: row 0 = middle bias (pad 0), row 1 = placeOut bias (pad = -1e30 mask).
    b2 = jnp.zeros((H2_PAD,), jnp.float32).at[0:N_MID].set(bm)
    b3 = jnp.full((H2_PAD,), NEG_BIG, jnp.float32).at[0:N_OUT].set(bo)
    b23 = jnp.stack([b2, b3], axis=0)

    packed = dict(w1=w1, w2=w2, w3=w3, b23=b23)
    return raw, packed


@jax.jit
def placenet_forward(packed, b_top, b, pieces, piece):
    # Single fused input row: [piece | b | pieces | zeros | 1.0 (bias lane)].
    xin = jnp.concatenate([
        piece.astype(jnp.float32),
        b.astype(jnp.float32),
        pieces.astype(jnp.float32),
        jnp.zeros((BIAS_LANE - D_IN,), jnp.float32),
        jnp.ones((1,), jnp.float32),
    ]).reshape(1, LANE)
    btop = b_top.reshape(1, N_OUT).astype(jnp.float32)

    vmem = pltpu.MemorySpace.VMEM
    out = pl.pallas_call(
        placenet_kernel,
        out_shape=jax.ShapeDtypeStruct((1, N_OUT), jnp.float32),
        in_specs=[pl.BlockSpec(memory_space=vmem)] * 6,
        out_specs=pl.BlockSpec(memory_space=vmem),
    )(xin, btop, packed["w1"], packed["w2"], packed["w3"], packed["b23"])
    return out[0]


def reference_forward(raw, b_top, b, pieces, piece):
    relu = lambda v: jnp.maximum(v, 0.0)
    x0 = piece @ raw["wp"] + raw["bp"]
    x1 = b @ raw["wb"] + raw["bb"]
    y = pieces @ raw["wq"] + raw["bq"]
    z = relu(x0) + relu(x1) + relu(y)
    h = relu(z @ raw["wm"] + raw["bm"])
    p = jax.nn.softmax(h @ raw["wo"] + raw["bo"])
    legal = p * (1.0 - b_top.reshape(-1))
    return legal / jnp.maximum(jnp.sum(jnp.abs(legal)), 1e-12)


if __name__ == "__main__":
    key = jax.random.PRNGKey(0)
    kparam, kin = jax.random.split(key)
    raw, packed = init_params(kparam)

    k1, k2, k3, k4 = jax.random.split(kin, 4)
    b_top = jax.random.bernoulli(k1, 0.3, (4, 4)).astype(jnp.float32)
    b_top = b_top.at[0, 0].set(0.0)  # ensure at least one legal placement
    b = jax.random.normal(k2, (80,), jnp.float32)
    pieces = jax.random.normal(k3, (16,), jnp.float32)
    piece = jax.random.normal(k4, (4,), jnp.float32)

    out = placenet_forward(packed, b_top, b, pieces, piece)
    out = jax.block_until_ready(out)
    ref = reference_forward(raw, b_top, b, pieces, piece)

    assert out.shape == (16,)
    # Raw output includes the EUP approx-reciprocal in the final normalize,
    # so allow a looser tolerance on absolute values.
    assert jnp.allclose(out, ref, atol=2e-3, rtol=2e-3), (out, ref)
    # The approx-reciprocal scale factor cancels under renormalization, so the
    # structural math (fused block-diag matmul, softmax cancellation, baked
    # -1e30 mask) must match the reference tightly.
    out_renorm = out / jnp.sum(out)
    assert jnp.allclose(out_renorm, ref, atol=1e-5, rtol=1e-5), (out_renorm, ref)
    print("KERNEL_OK")
</pallas_src>

<mosaic_0001>
module attributes {stable_mosaic.version = 11 : i64} {
  func.func @placenet_kernel(%arg0: memref<1x128xf32, #tpu.memory_space<vmem>>, %arg1: memref<1x16xf32, #tpu.memory_space<vmem>>, %arg2: memref<128x768xf32, #tpu.memory_space<vmem>>, %arg3: memref<256x128xf32, #tpu.memory_space<vmem>>, %arg4: memref<128x128xf32, #tpu.memory_space<vmem>>, %arg5: memref<2x128xf32, #tpu.memory_space<vmem>>, %arg6: memref<1x16xf32, #tpu.memory_space<vmem>>) attributes {dimension_semantics = [], scalar_prefetch = 0 : i64, scratch_operands = 0 : i64, tpu.core_type = #tpu.core_type<tc>} {
    %c0 = arith.constant 0 : index
    %c0_0 = arith.constant 0 : index
    %0 = vector.load %arg0[%c0, %c0_0] : memref<1x128xf32, #tpu.memory_space<vmem>>, vector<1x128xf32>
    %c0_1 = arith.constant 0 : index
    %c0_2 = arith.constant 0 : index
    %1 = vector.load %arg2[%c0_1, %c0_2] : memref<128x768xf32, #tpu.memory_space<vmem>>, vector<128x768xf32>
    %cst = arith.constant dense<0.000000e+00> : vector<1x768xf32>
    %2 = tpu.matmul %0, %1, %cst {dimension_numbers = #tpu.dot_dimension_numbers<[1], [0], [0], [1], [0, 0, 1, 1], [], []>} : vector<1x128xf32>, vector<128x768xf32>, vector<1x768xf32> -> vector<1x768xf32>
    %cst_3 = arith.constant 0.000000e+00 : f32
    %3 = vector.broadcast %cst_3 : f32 to vector<1x768xf32>
    %4 = arith.maximumf %2, %3 : vector<1x768xf32>
    %5 = vector.extract_strided_slice %4 {offsets = [0, 0], sizes = [1, 256], strides = [1, 1]} : vector<1x768xf32> to vector<1x256xf32>
    %6 = vector.extract_strided_slice %4 {offsets = [0, 256], sizes = [1, 256], strides = [1, 1]} : vector<1x768xf32> to vector<1x256xf32>
    %7 = arith.addf %5, %6 : vector<1x256xf32>
    %8 = vector.extract_strided_slice %4 {offsets = [0, 512], sizes = [1, 256], strides = [1, 1]} : vector<1x768xf32> to vector<1x256xf32>
    %9 = arith.addf %7, %8 : vector<1x256xf32>
    %c0_4 = arith.constant 0 : index
    %c0_5 = arith.constant 0 : index
    %10 = vector.load %arg5[%c0_4, %c0_5] : memref<2x128xf32, #tpu.memory_space<vmem>>, vector<2x128xf32>
    %c0_6 = arith.constant 0 : index
    %c0_7 = arith.constant 0 : index
    %11 = vector.load %arg3[%c0_6, %c0_7] : memref<256x128xf32, #tpu.memory_space<vmem>>, vector<256x128xf32>
    %cst_8 = arith.constant dense<0.000000e+00> : vector<1x128xf32>
    %12 = tpu.matmul %9, %11, %cst_8 {dimension_numbers = #tpu.dot_dimension_numbers<[1], [0], [0], [1], [0, 0, 1, 1], [], []>} : vector<1x256xf32>, vector<256x128xf32>, vector<1x128xf32> -> vector<1x128xf32>
    %13 = vector.extract_strided_slice %10 {offsets = [0, 0], sizes = [1, 128], strides = [1, 1]} : vector<2x128xf32> to vector<1x128xf32>
    %14 = arith.addf %12, %13 : vector<1x128xf32>
    %cst_9 = arith.constant 0.000000e+00 : f32
    %15 = vector.broadcast %cst_9 : f32 to vector<1x128xf32>
    %16 = arith.maximumf %14, %15 : vector<1x128xf32>
    %c0_10 = arith.constant 0 : index
    %c0_11 = arith.constant 0 : index
    %17 = vector.load %arg4[%c0_10, %c0_11] : memref<128x128xf32, #tpu.memory_space<vmem>>, vector<128x128xf32>
    %cst_12 = arith.constant dense<0.000000e+00> : vector<1x128xf32>
    %18 = tpu.matmul %16, %17, %cst_12 {dimension_numbers = #tpu.dot_dimension_numbers<[1], [0], [0], [1], [0, 0, 1, 1], [], []>} : vector<1x128xf32>, vector<128x128xf32>, vector<1x128xf32> -> vector<1x128xf32>
    %19 = vector.extract_strided_slice %10 {offsets = [1, 0], sizes = [1, 128], strides = [1, 1]} : vector<2x128xf32> to vector<1x128xf32>
    %20 = arith.addf %18, %19 : vector<1x128xf32>
    %cst_13 = arith.constant dense<0xFF800000> : vector<1xf32>
    %21 = vector.multi_reduction <maximumf>, %20, %cst_13 [1] : vector<1x128xf32> to vector<1xf32>
    %22 = vector.shape_cast %21 : vector<1xf32> to vector<1x1xf32>
    %23 = vector.broadcast %22 : vector<1x1xf32> to vector<1x128xf32>
    %24 = arith.subf %20, %23 : vector<1x128xf32>
    %25 = math.exp %24 : vector<1x128xf32>
    %26 = vector.extract_strided_slice %25 {offsets = [0, 0], sizes = [1, 16], strides = [1, 1]} : vector<1x128xf32> to vector<1x16xf32>
    %c0_14 = arith.constant 0 : index
    %c0_15 = arith.constant 0 : index
    %27 = vector.load %arg1[%c0_14, %c0_15] : memref<1x16xf32, #tpu.memory_space<vmem>>, vector<1x16xf32>
    %cst_16 = arith.constant 1.000000e+00 : f32
    %28 = vector.broadcast %cst_16 : f32 to vector<1x16xf32>
    %29 = arith.subf %28, %27 : vector<1x16xf32>
    %30 = arith.mulf %26, %29 : vector<1x16xf32>
    %cst_17 = arith.constant dense<0.000000e+00> : vector<1xf32>
    %31 = vector.multi_reduction <add>, %30, %cst_17 [1] : vector<1x16xf32> to vector<1xf32>
    %32 = vector.shape_cast %31 : vector<1xf32> to vector<1x1xf32>
    %cst_18 = arith.constant 9.99999996E-13 : f32
    %33 = vector.broadcast %cst_18 : f32 to vector<1x1xf32>
    %34 = arith.maximumf %32, %33 : vector<1x1xf32>
    %35 = tpu.reciprocal %34 {approx = true} : vector<1x1xf32> -> vector<1x1xf32>
    %36 = vector.broadcast %35 : vector<1x1xf32> to vector<1x16xf32>
    %37 = arith.mulf %30, %36 : vector<1x16xf32>
    %c0_19 = arith.constant 0 : index
    %c0_20 = arith.constant 0 : index
    %38 = vector.load %arg6[%c0_19, %c0_20] : memref<1x16xf32, #tpu.memory_space<vmem>>, vector<1x16xf32>
    tpu.vector_store %arg6[%c0_19, %c0_20], %37 {strides = array<i32>} : memref<1x16xf32, #tpu.memory_space<vmem>>, vector<1x16xf32>,
    return
  }
}

</mosaic_0001>

<llo_original>
// kernel: placenet_forward.1
$region0: #{placenet_forward.1}
  #allocation0 [shape = 'u32[]', space=smem, size = 0x4, offset = 0x4, fixed_abs, tag = 'smem constant byte address 0x4 - core index']
  #allocation1 [shape = 'u32[144,128]{1,0:T(1,128)}', space=vmem, size = 0x12000, scoped, tag = 'internal scratch']
  %s0 = inlined_call_operand.vmem [shape: f32[1,128], index: 0, kind: input, shape index: {}]
  %s1 = inlined_call_operand.vmem [shape: f32[1,16], index: 1, kind: input, shape index: {}]
  %s2 = inlined_call_operand.hbm [shape: f32[128,768], index: 2, kind: input, shape index: {}]
  %s3 = inlined_call_operand.hbm [shape: f32[256,128], index: 3, kind: input, shape index: {}]
  %s4 = inlined_call_operand.hbm [shape: f32[128,128], index: 4, kind: input, shape index: {}]
  %s5 = inlined_call_operand.vmem [shape: f32[2,128], index: 5, kind: input, shape index: {}]
  %s6 = inlined_call_operand.hbm [shape: f32[1,16], index: 6, kind: output, shape index: {}]
  %s7 = sld [smem:[#allocation0]]
  $region46: #{placenet_forward.1} parent=0
    _
  %s9 = ssub.s32 1, %s7
  %s10 = scalar_select 0, %s9, %s7
  $region1: #{placenet_forward.1} parent=0
    #allocation2 [shape = 'u8[393216]{0}', space=vmem, size = 0x60000, scoped, tag = 'input window, operand 2, single buffered']
    #allocation3 [shape = 's32[1]{0}', space=sflag, size = 0x4, scoped, tag = 'scoped memory for placenet_forward.1']
    #allocation4 [shape = 's32[1]{0}', space=sflag, size = 0x4, scoped, tag = 'scoped memory for placenet_forward.1']
    #allocation5 [shape = 'u8[131072]{0}', space=vmem, size = 0x20000, scoped, tag = 'input window, operand 3, single buffered']
    #allocation6 [shape = 's32[1]{0}', space=sflag, size = 0x4, scoped, tag = 'scoped memory for placenet_forward.1']
    #allocation7 [shape = 'u8[65536]{0}', space=vmem, size = 0x10000, scoped, tag = 'input window, operand 4, single buffered']
    #allocation8 [shape = 'u8[512]{0}', space=vmem, size = 0x400, scoped, tag = 'output window, operand 0, single buffered']
    %11 = vsyncpa [#allocation3], 0
    %12 = vsyncpa [#allocation6], 0
    %13 = vsyncpa [#allocation4], 0
    // Predicated region
    $region2: #{placenet_forward.1} parent=1 // pred_check
      _
    $region3: #{placenet_forward.1} parent=1 // pred_check_branch
      %15 = sbr.rel (0) target = $region5
    $region4: #{placenet_forward.1} parent=1 // pred_region
      _
    $region5: #{placenet_forward.1} parent=1 // pred_fallthru
      _
    // Predicated region
    $region6: #{placenet_forward.1} parent=1 // pred_check
      _
    $region7: #{placenet_forward.1} parent=1 // pred_check_branch
      %17 = sbr.rel (0) target = $region9
    $region8: #{placenet_forward.1} parent=1 // pred_region
      _
    $region9: #{placenet_forward.1} parent=1 // pred_fallthru
      _
    // Predicated region
    $region10: #{placenet_forward.1} parent=1 // pred_check
      _
    $region11: #{placenet_forward.1} parent=1 // pred_check_branch
      %19 = sbr.rel (0) target = $region13
    $region12: #{placenet_forward.1} parent=1 // pred_region
      %s21 = ssub.s32 12288, 12288
      %22 = vsyncadd [#allocation3], %s21
      %s23 = sshll.u32 [#allocation2], 4
      %s24 = int_to_ptr.vmem [resolvable:$true] %s23
      %29 = dma.hbm_to_vmem [thread:$0]  %s2, 12288, %s24, [#allocation3], 768, 768, 48
    $region13: #{placenet_forward.1} parent=1 // pred_fallthru
      _
    // Predicated region
    $region14: #{placenet_forward.1} parent=1 // pred_check
      _
    $region15: #{placenet_forward.1} parent=1 // pred_check_branch
      %31 = sbr.rel (0) target = $region17
    $region16: #{placenet_forward.1} parent=1 // pred_region
      %s33 = ssub.s32 4096, 4096
      %34 = vsyncadd [#allocation6], %s33
      %s35 = sshll.u32 [#allocation5], 4
      %s36 = int_to_ptr.vmem [resolvable:$true] %s35
      %41 = dma.hbm_to_vmem [thread:$0]  %s3, 4096, %s36, [#allocation6], 128, 128, 8
    $region17: #{placenet_forward.1} parent=1 // pred_fallthru
      _
    // Predicated region
    $region18: #{placenet_forward.1} parent=1 // pred_check
      _
    $region19: #{placenet_forward.1} parent=1 // pred_check_branch
      %43 = sbr.rel (0) target = $region21
    $region20: #{placenet_forward.1} parent=1 // pred_region
      %s45 = ssub.s32 2048, 2048
      %46 = vsyncadd [#allocation6], %s45
      %s47 = sshll.u32 [#allocation7], 4
      %s48 = int_to_ptr.vmem [resolvable:$true] %s47
      %53 = dma.hbm_to_vmem [thread:$0]  %s4, 2048, %s48, [#allocation6], 128, 128, 8
    $region21: #{placenet_forward.1} parent=1 // pred_fallthru
      _
    // Predicated region
    $region22: #{placenet_forward.1} parent=1 // pred_check
      _
    $region23: #{placenet_forward.1} parent=1 // pred_check_branch
      %55 = sbr.rel (0) target = $region25
    $region24: #{placenet_forward.1} parent=1 // pred_region
      _
    $region25: #{placenet_forward.1} parent=1 // pred_fallthru
      _
    // Predicated region
    $region26: #{placenet_forward.1} parent=1 // pred_check
      _
    $region27: #{placenet_forward.1} parent=1 // pred_check_branch
      %57 = sbr.rel (0) target = $region29
    $region28: #{placenet_forward.1} parent=1 // pred_region
      %58 = dma.done [#allocation3], 12288
    $region29: #{placenet_forward.1} parent=1 // pred_fallthru
      _
    // Predicated region
    $region30: #{placenet_forward.1} parent=1 // pred_check
      _
    $region31: #{placenet_forward.1} parent=1 // pred_check_branch
      %60 = sbr.rel (0) target = $region33
    $region32: #{placenet_forward.1} parent=1 // pred_region
      %61 = dma.done [#allocation6], 4096
    $region33: #{placenet_forward.1} parent=1 // pred_fallthru
      _
    // Predicated region
    $region34: #{placenet_forward.1} parent=1 // pred_check
      _
    $region35: #{placenet_forward.1} parent=1 // pred_check_branch
      %63 = sbr.rel (0) target = $region37
    $region36: #{placenet_forward.1} parent=1 // pred_region
      %64 = dma.done [#allocation6], 2048
    $region37: #{placenet_forward.1} parent=1 // pred_fallthru
      _
    %v65 = vld [vmem:[%s0] sm:$0x1]
    %v66 = vld [vmem:[#allocation2] sm:$0xff]
    %v67 = vld [vmem:[#allocation2 + $0x8] sm:$0xff]
    %v68 = vld [vmem:[#allocation2 + $0x10] sm:$0xff]
    %v69 = vld [vmem:[#allocation2 + $0x18] sm:$0xff]
    %v70 = vld [vmem:[#allocation2 + $0x20] sm:$0xff]
    %v71 = vld [vmem:[#allocation2 + $0x28] sm:$0xff]
    %v72 = vld [vmem:[#allocation2 + $0x30] sm:$0xff]
    %v73 = vld [vmem:[#allocation2 + $0x38] sm:$0xff]
    %v74 = vld [vmem:[#allocation2 + $0x40] sm:$0xff]
    %v75 = vld [vmem:[#allocation2 + $0x48] sm:$0xff]
    %v76 = vld [vmem:[#allocation2 + $0x50] sm:$0xff]
    %v77 = vld [vmem:[#allocation2 + $0x58] sm:$0xff]
    %v78 = vld [vmem:[#allocation2 + $0x60] sm:$0xff]
    %v79 = vld [vmem:[#allocation2 + $0x68] sm:$0xff]
    %v80 = vld [vmem:[#allocation2 + $0x70] sm:$0xff]
    %v81 = vld [vmem:[#allocation2 + $0x78] sm:$0xff]
    %v82 = vld [vmem:[#allocation2 + $0x80] sm:$0xff]
    %v83 = vld [vmem:[#allocation2 + $0x88] sm:$0xff]
    %v84 = vld [vmem:[#allocation2 + $0x90] sm:$0xff]
    %v85 = vld [vmem:[#allocation2 + $0x98] sm:$0xff]
    %v86 = vld [vmem:[#allocation2 + $0xa0] sm:$0xff]
    %v87 = vld [vmem:[#allocation2 + $0xa8] sm:$0xff]
    %v88 = vld [vmem:[#allocation2 + $0xb0] sm:$0xff]
    %v89 = vld [vmem:[#allocation2 + $0xb8] sm:$0xff]
    %v90 = vld [vmem:[#allocation2 + $0xc0] sm:$0xff]
    %v91 = vld [vmem:[#allocation2 + $0xc8] sm:$0xff]
    %v92 = vld [vmem:[#allocation2 + $0xd0] sm:$0xff]
    %v93 = vld [vmem:[#allocation2 + $0xd8] sm:$0xff]
    %v94 = vld [vmem:[#allocation2 + $0xe0] sm:$0xff]
    %v95 = vld [vmem:[#allocation2 + $0xe8] sm:$0xff]
    %v96 = vld [vmem:[#allocation2 + $0xf0] sm:$0xff]
    %v97 = vld [vmem:[#allocation2 + $0xf8] sm:$0xff]
    %v98 = vld [vmem:[#allocation2 + $0x100] sm:$0xff]
    %v99 = vld [vmem:[#allocation2 + $0x108] sm:$0xff]
    %v100 = vld [vmem:[#allocation2 + $0x110] sm:$0xff]
    %v101 = vld [vmem:[#allocation2 + $0x118] sm:$0xff]
    %v102 = vld [vmem:[#allocation2 + $0x120] sm:$0xff]
    %v103 = vld [vmem:[#allocation2 + $0x128] sm:$0xff]
    %v104 = vld [vmem:[#allocation2 + $0x130] sm:$0xff]
    %v105 = vld [vmem:[#allocation2 + $0x138] sm:$0xff]
    %v106 = vld [vmem:[#allocation2 + $0x140] sm:$0xff]
    %v107 = vld [vmem:[#allocation2 + $0x148] sm:$0xff]
    %v108 = vld [vmem:[#allocation2 + $0x150] sm:$0xff]
    %v109 = vld [vmem:[#allocation2 + $0x158] sm:$0xff]
    %v110 = vld [vmem:[#allocation2 + $0x160] sm:$0xff]
    %v111 = vld [vmem:[#allocation2 + $0x168] sm:$0xff]
    %v112 = vld [vmem:[#allocation2 + $0x170] sm:$0xff]
    %v113 = vld [vmem:[#allocation2 + $0x178] sm:$0xff]
    %v114 = vld [vmem:[#allocation2 + $0x180] sm:$0xff]
    %v115 = vld [vmem:[#allocation2 + $0x188] sm:$0xff]
    %v116 = vld [vmem:[#allocation2 + $0x190] sm:$0xff]
    %v117 = vld [vmem:[#allocation2 + $0x198] sm:$0xff]
    %v118 = vld [vmem:[#allocation2 + $0x1a0] sm:$0xff]
    %v119 = vld [vmem:[#allocation2 + $0x1a8] sm:$0xff]
    %v120 = vld [vmem:[#allocation2 + $0x1b0] sm:$0xff]
    %v121 = vld [vmem:[#allocation2 + $0x1b8] sm:$0xff]
    %v122 = vld [vmem:[#allocation2 + $0x1c0] sm:$0xff]
    %v123 = vld [vmem:[#allocation2 + $0x1c8] sm:$0xff]
    %v124 = vld [vmem:[#allocation2 + $0x1d0] sm:$0xff]
    %v125 = vld [vmem:[#allocation2 + $0x1d8] sm:$0xff]
    %v126 = vld [vmem:[#allocation2 + $0x1e0] sm:$0xff]
    %v127 = vld [vmem:[#allocation2 + $0x1e8] sm:$0xff]
    %v128 = vld [vmem:[#allocation2 + $0x1f0] sm:$0xff]
    %v129 = vld [vmem:[#allocation2 + $0x1f8] sm:$0xff]
    %v130 = vld [vmem:[#allocation2 + $0x200] sm:$0xff]
    %v131 = vld [vmem:[#allocation2 + $0x208] sm:$0xff]
    %v132 = vld [vmem:[#allocation2 + $0x210] sm:$0xff]
    %v133 = vld [vmem:[#allocation2 + $0x218] sm:$0xff]
    %v134 = vld [vmem:[#allocation2 + $0x220] sm:$0xff]
    %v135 = vld [vmem:[#allocation2 + $0x228] sm:$0xff]
    %v136 = vld [vmem:[#allocation2 + $0x230] sm:$0xff]
    %v137 = vld [vmem:[#allocation2 + $0x238] sm:$0xff]
    %v138 = vld [vmem:[#allocation2 + $0x240] sm:$0xff]
    %v139 = vld [vmem:[#allocation2 + $0x248] sm:$0xff]
    %v140 = vld [vmem:[#allocation2 + $0x250] sm:$0xff]
    %v141 = vld [vmem:[#allocation2 + $0x258] sm:$0xff]
    %v142 = vld [vmem:[#allocation2 + $0x260] sm:$0xff]
    %v143 = vld [vmem:[#allocation2 + $0x268] sm:$0xff]
    %v144 = vld [vmem:[#allocation2 + $0x270] sm:$0xff]
    %v145 = vld [vmem:[#allocation2 + $0x278] sm:$0xff]
    %v146 = vld [vmem:[#allocation2 + $0x280] sm:$0xff]
    %v147 = vld [vmem:[#allocation2 + $0x288] sm:$0xff]
    %v148 = vld [vmem:[#allocation2 + $0x290] sm:$0xff]
    %v149 = vld [vmem:[#allocation2 + $0x298] sm:$0xff]
    %v150 = vld [vmem:[#allocation2 + $0x2a0] sm:$0xff]
    %v151 = vld [vmem:[#allocation2 + $0x2a8] sm:$0xff]
    %v152 = vld [vmem:[#allocation2 + $0x2b0] sm:$0xff]
    %v153 = vld [vmem:[#allocation2 + $0x2b8] sm:$0xff]
    %v154 = vld [vmem:[#allocation2 + $0x2c0] sm:$0xff]
    %v155 = vld [vmem:[#allocation2 + $0x2c8] sm:$0xff]
    %v156 = vld [vmem:[#allocation2 + $0x2d0] sm:$0xff]
    %v157 = vld [vmem:[#allocation2 + $0x2d8] sm:$0xff]
    %v158 = vld [vmem:[#allocation2 + $0x2e0] sm:$0xff]
    %v159 = vld [vmem:[#allocation2 + $0x2e8] sm:$0xff]
    %v160 = vld [vmem:[#allocation2 + $0x2f0] sm:$0xff]
    %v161 = vld [vmem:[#allocation2 + $0x2f8] sm:$0xff]
    %162 = vmatprep.subr.mxu0 %v67
    %163 = vmatpush1.msra.mxu0 %v66
    %164 = vmatprep.subr.mxu0 %v73
    %165 = vmatpush1.msra.mxu0 %v72
    %166 = vmatprep.subr.mxu0 %v79
    %167 = vmatpush1.msra.mxu0 %v78
    %168 = vmatprep.subr.mxu0 %v85
    %169 = vmatpush1.msra.mxu0 %v84
    %170 = vmatprep.subr.mxu0 %v91
    %171 = vmatpush1.msra.mxu0 %v90
    %172 = vmatprep.subr.mxu0 %v97
    %173 = vmatpush1.msra.mxu0 %v96
    %174 = vmatprep.subr.mxu0 %v103
    %175 = vmatpush1.msra.mxu0 %v102
    %176 = vmatprep.subr.mxu0 %v109
    %177 = vmatpush1.msra.mxu0 %v108
    %178 = vmatprep.subr.mxu0 %v115
    %179 = vmatpush1.msra.mxu0 %v114
    %180 = vmatprep.subr.mxu0 %v121
    %181 = vmatpush1.msra.mxu0 %v120
    %182 = vmatprep.subr.mxu0 %v127
    %183 = vmatpush1.msra.mxu0 %v126
    %184 = vmatprep.subr.mxu0 %v133
    %185 = vmatpush1.msra.mxu0 %v132
    %186 = vmatprep.subr.mxu0 %v139
    %187 = vmatpush1.msra.mxu0 %v138
    %188 = vmatprep.subr.mxu0 %v145
    %189 = vmatpush1.msra.mxu0 %v144
    %190 = vmatprep.subr.mxu0 %v151
    %191 = vmatpush1.msra.mxu0 %v150
    %192 = vmatprep.subr.mxu0 %v157
    %193 = vmatpush1.msra.mxu0 %v156
    %194 = vmatprep.subr.mxu0 0.0
    %195 = vmatpush1.msra.mxu0 0.0
    %196 = vmatprep.subr.mxu0 0.0
    %197 = vmatpush1.msra.mxu0 0.0
    %198 = vmatprep.subr.mxu0 0.0
    %199 = vmatpush1.msra.mxu0 0.0
    %200 = vmatprep.subr.mxu0 0.0
    %201 = vmatpush1.msra.mxu0 0.0
    %202 = vmatprep.subr.mxu0 0.0
    %203 = vmatpush1.msra.mxu0 0.0
    %204 = vmatprep.subr.mxu0 0.0
    %205 = vmatpush1.msra.mxu0 0.0
    %206 = vmatprep.subr.mxu0 0.0
    %207 = vmatpush1.msra.mxu0 0.0
    %208 = vmatprep.subr.mxu0 0.0
    %209 = vmatpush1.msra.mxu0 0.0
    %210 = vmatprep.subr.mxu0 0.0
    %211 = vmatpush1.msra.mxu0 0.0
    %212 = vmatprep.subr.mxu0 0.0
    %213 = vmatpush1.msra.mxu0 0.0
    %214 = vmatprep.subr.mxu0 0.0
    %215 = vmatpush1.msra.mxu0 0.0
    %216 = vmatprep.subr.mxu0 0.0
    %217 = vmatpush1.msra.mxu0 0.0
    %218 = vmatprep.subr.mxu0 0.0
    %219 = vmatpush1.msra.mxu0 0.0
    %220 = vmatprep.subr.mxu0 0.0
    %221 = vmatpush1.msra.mxu0 0.0
    %222 = vmatprep.subr.mxu0 0.0
    %223 = vmatpush1.msra.mxu0 0.0
    %224 = vmatprep.subr.mxu0 0.0
    %225 = vmatpush1.msra.mxu0 0.0
    %226 = vmatprep.mubr.f32.mxu0 0.0
    %227 = vmatmul.mubr.f32.gmra.mrb[0].mxu0 %v65
    %v228 = vpop.f32.mrb[0].mxu0
    %v229 = vadd.f32 0.0, %v228
    %v230 = vpop.f32.mrb[0].mxu0
    %v231 = vadd.f32 0.0, %v230
    %232 = vdwg.mxu0
    %233 = vmatprep.subr.mxu0 %v69
    %234 = vmatpush1.msra.mxu0 %v68
    %235 = vmatprep.subr.mxu0 %v75
    %236 = vmatpush1.msra.mxu0 %v74
    %237 = vmatprep.subr.mxu0 %v81
    %238 = vmatpush1.msra.mxu0 %v80
    %239 = vmatprep.subr.mxu0 %v87
    %240 = vmatpush1.msra.mxu0 %v86
    %241 = vmatprep.subr.mxu0 %v93
    %242 = vmatpush1.msra.mxu0 %v92
    %243 = vmatprep.subr.mxu0 %v99
    %244 = vmatpush1.msra.mxu0 %v98
    %245 = vmatprep.subr.mxu0 %v105
    %246 = vmatpush1.msra.mxu0 %v104
    %247 = vmatprep.subr.mxu0 %v111
    %248 = vmatpush1.msra.mxu0 %v110
    %249 = vmatprep.subr.mxu0 %v117
    %250 = vmatpush1.msra.mxu0 %v116
    %251 = vmatprep.subr.mxu0 %v123
    %252 = vmatpush1.msra.mxu0 %v122
    %253 = vmatprep.subr.mxu0 %v129
    %254 = vmatpush1.msra.mxu0 %v128
    %255 = vmatprep.subr.mxu0 %v135
    %256 = vmatpush1.msra.mxu0 %v134
    %257 = vmatprep.subr.mxu0 %v141
    %258 = vmatpush1.msra.mxu0 %v140
    %259 = vmatprep.subr.mxu0 %v147
    %260 = vmatpush1.msra.mxu0 %v146
    %261 = vmatprep.subr.mxu0 %v153
    %262 = vmatpush1.msra.mxu0 %v152
    %263 = vmatprep.subr.mxu0 %v159
    %264 = vmatpush1.msra.mxu0 %v158
    %265 = vmatprep.subr.mxu0 0.0
    %266 = vmatpush1.msra.mxu0 0.0
    %267 = vmatprep.subr.mxu0 0.0
    %268 = vmatpush1.msra.mxu0 0.0
    %269 = vmatprep.subr.mxu0 0.0
    %270 = vmatpush1.msra.mxu0 0.0
    %271 = vmatprep.subr.mxu0 0.0
    %272 = vmatpush1.msra.mxu0 0.0
    %273 = vmatprep.subr.mxu0 0.0
    %274 = vmatpush1.msra.mxu0 0.0
    %275 = vmatprep.subr.mxu0 0.0
    %276 = vmatpush1.msra.mxu0 0.0
    %277 = vmatprep.subr.mxu0 0.0
    %278 = vmatpush1.msra.mxu0 0.0
    %279 = vmatprep.subr.mxu0 0.0
    %280 = vmatpush1.msra.mxu0 0.0
    %281 = vmatprep.subr.mxu0 0.0
    %282 = vmatpush1.msra.mxu0 0.0
    %283 = vmatprep.subr.mxu0 0.0
    %284 = vmatpush1.msra.mxu0 0.0
    %285 = vmatprep.subr.mxu0 0.0
    %286 = vmatpush1.msra.mxu0 0.0
    %287 = vmatprep.subr.mxu0 0.0
    %288 = vmatpush1.msra.mxu0 0.0
    %289 = vmatprep.subr.mxu0 0.0
    %290 = vmatpush1.msra.mxu0 0.0
    %291 = vmatprep.subr.mxu0 0.0
    %292 = vmatpush1.msra.mxu0 0.0
    %293 = vmatprep.subr.mxu0 0.0
    %294 = vmatpush1.msra.mxu0 0.0
    %295 = vmatprep.subr.mxu0 0.0
    %296 = vmatpush1.msra.mxu0 0.0
    %297 = vmatprep.mubr.f32.mxu0 0.0
    %298 = vmatmul.mubr.f32.gmra.mrb[0].mxu0 %v65
    %v299 = vpop.f32.mrb[0].mxu0
    %v300 = vadd.f32 0.0, %v299
    %v301 = vpop.f32.mrb[0].mxu0
    %v302 = vadd.f32 0.0, %v301
    %303 = vdwg.mxu0
    %304 = vmatprep.subr.mxu0 %v71
    %305 = vmatpush1.msra.mxu0 %v70
    %306 = vmatprep.subr.mxu0 %v77
    %307 = vmatpush1.msra.mxu0 %v76
    %308 = vmatprep.subr.mxu0 %v83
    %309 = vmatpush1.msra.mxu0 %v82
    %310 = vmatprep.subr.mxu0 %v89
    %311 = vmatpush1.msra.mxu0 %v88
    %312 = vmatprep.subr.mxu0 %v95
    %313 = vmatpush1.msra.mxu0 %v94
    %314 = vmatprep.subr.mxu0 %v101
    %315 = vmatpush1.msra.mxu0 %v100
    %316 = vmatprep.subr.mxu0 %v107
    %317 = vmatpush1.msra.mxu0 %v106
    %318 = vmatprep.subr.mxu0 %v113
    %319 = vmatpush1.msra.mxu0 %v112
    %320 = vmatprep.subr.mxu0 %v119
    %321 = vmatpush1.msra.mxu0 %v118
    %322 = vmatprep.subr.mxu0 %v125
    %323 = vmatpush1.msra.mxu0 %v124
    %324 = vmatprep.subr.mxu0 %v131
    %325 = vmatpush1.msra.mxu0 %v130
    %326 = vmatprep.subr.mxu0 %v137
    %327 = vmatpush1.msra.mxu0 %v136
    %328 = vmatprep.subr.mxu0 %v143
    %329 = vmatpush1.msra.mxu0 %v142
    %330 = vmatprep.subr.mxu0 %v149
    %331 = vmatpush1.msra.mxu0 %v148
    %332 = vmatprep.subr.mxu0 %v155
    %333 = vmatpush1.msra.mxu0 %v154
    %334 = vmatprep.subr.mxu0 %v161
    %335 = vmatpush1.msra.mxu0 %v160
    %336 = vmatprep.subr.mxu0 0.0
    %337 = vmatpush1.msra.mxu0 0.0
    %338 = vmatprep.subr.mxu0 0.0
    %339 = vmatpush1.msra.mxu0 0.0
    %340 = vmatprep.subr.mxu0 0.0
    %341 = vmatpush1.msra.mxu0 0.0
    %342 = vmatprep.subr.mxu0 0.0
    %343 = vmatpush1.msra.mxu0 0.0
    %344 = vmatprep.subr.mxu0 0.0
    %345 = vmatpush1.msra.mxu0 0.0
    %346 = vmatprep.subr.mxu0 0.0
    %347 = vmatpush1.msra.mxu0 0.0
    %348 = vmatprep.subr.mxu0 0.0
    %349 = vmatpush1.msra.mxu0 0.0
    %350 = vmatprep.subr.mxu0 0.0
    %351 = vmatpush1.msra.mxu0 0.0
    %352 = vmatprep.subr.mxu0 0.0
    %353 = vmatpush1.msra.mxu0 0.0
    %354 = vmatprep.subr.mxu0 0.0
    %355 = vmatpush1.msra.mxu0 0.0
    %356 = vmatprep.subr.mxu0 0.0
    %357 = vmatpush1.msra.mxu0 0.0
    %358 = vmatprep.subr.mxu0 0.0
    %359 = vmatpush1.msra.mxu0 0.0
    %360 = vmatprep.subr.mxu0 0.0
    %361 = vmatpush1.msra.mxu0 0.0
    %362 = vmatprep.subr.mxu0 0.0
    %363 = vmatpush1.msra.mxu0 0.0
    %364 = vmatprep.subr.mxu0 0.0
    %365 = vmatpush1.msra.mxu0 0.0
    %366 = vmatprep.subr.mxu0 0.0
    %367 = vmatpush1.msra.mxu0 0.0
    %368 = vmatprep.mubr.f32.mxu0 0.0
    %369 = vmatmul.mubr.f32.gmra.mrb[0].mxu0 %v65
    %v370 = vpop.f32.mrb[0].mxu0
    %v371 = vadd.f32 0.0, %v370
    %v372 = vpop.f32.mrb[0].mxu0
    %v373 = vadd.f32 0.0, %v372
    %374 = vdwg.mxu0
    %v375 = vmax.f32 %v229, 0.0
    %v376 = vmax.f32 %v231, 0.0
    %v377 = vmax.f32 %v300, 0.0
    %v378 = vmax.f32 %v302, 0.0
    %v379 = vmax.f32 %v371, 0.0
    %v380 = vmax.f32 %v373, 0.0
    %v381 = vadd.f32 %v375, %v377
    %v382 = vadd.f32 %v376, %v378
    %v383 = vadd.f32 %v381, %v379
    %v384 = vadd.f32 %v382, %v380
    %v385 = vld [vmem:[%s5] sm:$0x3]
    %v386 = vld [vmem:[#allocation5] sm:$0xff]
    %v387 = vld [vmem:[#allocation5 + $0x8] sm:$0xff]
    %v388 = vld [vmem:[#allocation5 + $0x10] sm:$0xff]
    %v389 = vld [vmem:[#allocation5 + $0x18] sm:$0xff]
    %v390 = vld [vmem:[#allocation5 + $0x20] sm:$0xff]
    %v391 = vld [vmem:[#allocation5 + $0x28] sm:$0xff]
    %v392 = vld [vmem:[#allocation5 + $0x30] sm:$0xff]
    %v393 = vld [vmem:[#allocation5 + $0x38] sm:$0xff]
    %v394 = vld [vmem:[#allocation5 + $0x40] sm:$0xff]
    %v395 = vld [vmem:[#allocation5 + $0x48] sm:$0xff]
    %v396 = vld [vmem:[#allocation5 + $0x50] sm:$0xff]
    %v397 = vld [vmem:[#allocation5 + $0x58] sm:$0xff]
    %v398 = vld [vmem:[#allocation5 + $0x60] sm:$0xff]
    %v399 = vld [vmem:[#allocation5 + $0x68] sm:$0xff]
    %v400 = vld [vmem:[#allocation5 + $0x70] sm:$0xff]
    %v401 = vld [vmem:[#allocation5 + $0x78] sm:$0xff]
    %v402 = vld [vmem:[#allocation5 + $0x80] sm:$0xff]
    %v403 = vld [vmem:[#allocation5 + $0x88] sm:$0xff]
    %v404 = vld [vmem:[#allocation5 + $0x90] sm:$0xff]
    %v405 = vld [vmem:[#allocation5 + $0x98] sm:$0xff]
    %v406 = vld [vmem:[#allocation5 + $0xa0] sm:$0xff]
    %v407 = vld [vmem:[#allocation5 + $0xa8] sm:$0xff]
    %v408 = vld [vmem:[#allocation5 + $0xb0] sm:$0xff]
    %v409 = vld [vmem:[#allocation5 + $0xb8] sm:$0xff]
    %v410 = vld [vmem:[#allocation5 + $0xc0] sm:$0xff]
    %v411 = vld [vmem:[#allocation5 + $0xc8] sm:$0xff]
    %v412 = vld [vmem:[#allocation5 + $0xd0] sm:$0xff]
    %v413 = vld [vmem:[#allocation5 + $0xd8] sm:$0xff]
    %v414 = vld [vmem:[#allocation5 + $0xe0] sm:$0xff]
    %v415 = vld [vmem:[#allocation5 + $0xe8] sm:$0xff]
    %v416 = vld [vmem:[#allocation5 + $0xf0] sm:$0xff]
    %v417 = vld [vmem:[#allocation5 + $0xf8] sm:$0xff]
    %418 = vmatprep.subr.mxu0 0.0
    %419 = vmatpush1.msra.mxu0 %v386
    %420 = vmatprep.subr.mxu0 0.0
    %421 = vmatpush1.msra.mxu0 %v387
    %422 = vmatprep.subr.mxu0 0.0
    %423 = vmatpush1.msra.mxu0 %v388
    %424 = vmatprep.subr.mxu0 0.0
    %425 = vmatpush1.msra.mxu0 %v389
    %426 = vmatprep.subr.mxu0 0.0
    %427 = vmatpush1.msra.mxu0 %v390
    %428 = vmatprep.subr.mxu0 0.0
    %429 = vmatpush1.msra.mxu0 %v391
    %430 = vmatprep.subr.mxu0 0.0
    %431 = vmatpush1.msra.mxu0 %v392
    %432 = vmatprep.subr.mxu0 0.0
    %433 = vmatpush1.msra.mxu0 %v393
    %434 = vmatprep.subr.mxu0 0.0
    %435 = vmatpush1.msra.mxu0 %v394
    %436 = vmatprep.subr.mxu0 0.0
    %437 = vmatpush1.msra.mxu0 %v395
    %438 = vmatprep.subr.mxu0 0.0
    %439 = vmatpush1.msra.mxu0 %v396
    %440 = vmatprep.subr.mxu0 0.0
    %441 = vmatpush1.msra.mxu0 %v397
    %442 = vmatprep.subr.mxu0 0.0
    %443 = vmatpush1.msra.mxu0 %v398
    %444 = vmatprep.subr.mxu0 0.0
    %445 = vmatpush1.msra.mxu0 %v399
    %446 = vmatprep.subr.mxu0 0.0
    %447 = vmatpush1.msra.mxu0 %v400
    %448 = vmatprep.subr.mxu0 0.0
    %449 = vmatpush1.msra.mxu0 %v401
    %450 = vmatprep.subr.mxu0 0.0
    %451 = vmatpush1.msra.mxu0 %v402
    %452 = vmatprep.subr.mxu0 0.0
    %453 = vmatpush1.msra.mxu0 %v403
    %454 = vmatprep.subr.mxu0 0.0
    %455 = vmatpush1.msra.mxu0 %v404
    %456 = vmatprep.subr.mxu0 0.0
    %457 = vmatpush1.msra.mxu0 %v405
    %458 = vmatprep.subr.mxu0 0.0
    %459 = vmatpush1.msra.mxu0 %v406
    %460 = vmatprep.subr.mxu0 0.0
    %461 = vmatpush1.msra.mxu0 %v407
    %462 = vmatprep.subr.mxu0 0.0
    %463 = vmatpush1.msra.mxu0 %v408
    %464 = vmatprep.subr.mxu0 0.0
    %465 = vmatpush1.msra.mxu0 %v409
    %466 = vmatprep.subr.mxu0 0.0
    %467 = vmatpush1.msra.mxu0 %v410
    %468 = vmatprep.subr.mxu0 0.0
    %469 = vmatpush1.msra.mxu0 %v411
    %470 = vmatprep.subr.mxu0 0.0
    %471 = vmatpush1.msra.mxu0 %v412
    %472 = vmatprep.subr.mxu0 0.0
    %473 = vmatpush1.msra.mxu0 %v413
    %474 = vmatprep.subr.mxu0 0.0
    %475 = vmatpush1.msra.mxu0 %v414
    %476 = vmatprep.subr.mxu0 0.0
    %477 = vmatpush1.msra.mxu0 %v415
    %478 = vmatprep.subr.mxu0 0.0
    %479 = vmatpush1.msra.mxu0 %v416
    %480 = vmatprep.subr.mxu0 0.0
    %481 = vmatpush1.msra.mxu0 %v417
    %482 = vmatprep.mubr.f32.mxu0 %v384
    %483 = vmatmul.mubr.f32.gmra.mrb[0].mxu0 %v383
    %v484 = vpop.f32.mrb[0].mxu0
    %v485 = vadd.f32 %v385, %v484
    %v486 = vpop.f32.mrb[0].mxu0
    %487 = vdwg.mxu0
    %v488 = vmax.f32 %v485, 0.0
    %v489 = vld [vmem:[#allocation7] sm:$0xff]
    %v490 = vld [vmem:[#allocation7 + $0x8] sm:$0xff]
    %v491 = vld [vmem:[#allocation7 + $0x10] sm:$0xff]
    %v492 = vld [vmem:[#allocation7 + $0x18] sm:$0xff]
    %v493 = vld [vmem:[#allocation7 + $0x20] sm:$0xff]
    %v494 = vld [vmem:[#allocation7 + $0x28] sm:$0xff]
    %v495 = vld [vmem:[#allocation7 + $0x30] sm:$0xff]
    %v496 = vld [vmem:[#allocation7 + $0x38] sm:$0xff]
    %v497 = vld [vmem:[#allocation7 + $0x40] sm:$0xff]
    %v498 = vld [vmem:[#allocation7 + $0x48] sm:$0xff]
    %v499 = vld [vmem:[#allocation7 + $0x50] sm:$0xff]
    %v500 = vld [vmem:[#allocation7 + $0x58] sm:$0xff]
    %v501 = vld [vmem:[#allocation7 + $0x60] sm:$0xff]
    %v502 = vld [vmem:[#allocation7 + $0x68] sm:$0xff]
    %v503 = vld [vmem:[#allocation7 + $0x70] sm:$0xff]
    %v504 = vld [vmem:[#allocation7 + $0x78] sm:$0xff]
    %v506 = vrot.slane %v385, 1
    %508 = vmatprep.subr.mxu0 0.0
    %509 = vmatpush1.msra.mxu0 %v489
    %510 = vmatprep.subr.mxu0 0.0
    %511 = vmatpush1.msra.mxu0 %v490
    %512 = vmatprep.subr.mxu0 0.0
    %513 = vmatpush1.msra.mxu0 %v491
    %514 = vmatprep.subr.mxu0 0.0
    %515 = vmatpush1.msra.mxu0 %v492
    %516 = vmatprep.subr.mxu0 0.0
    %517 = vmatpush1.msra.mxu0 %v493
    %518 = vmatprep.subr.mxu0 0.0
    %519 = vmatpush1.msra.mxu0 %v494
    %520 = vmatprep.subr.mxu0 0.0
    %521 = vmatpush1.msra.mxu0 %v495
    %522 = vmatprep.subr.mxu0 0.0
    %523 = vmatpush1.msra.mxu0 %v496
    %524 = vmatprep.subr.mxu0 0.0
    %525 = vmatpush1.msra.mxu0 %v497
    %526 = vmatprep.subr.mxu0 0.0
    %527 = vmatpush1.msra.mxu0 %v498
    %528 = vmatprep.subr.mxu0 0.0
    %529 = vmatpush1.msra.mxu0 %v499
    %530 = vmatprep.subr.mxu0 0.0
    %531 = vmatpush1.msra.mxu0 %v500
    %532 = vmatprep.subr.mxu0 0.0
    %533 = vmatpush1.msra.mxu0 %v501
    %534 = vmatprep.subr.mxu0 0.0
    %535 = vmatpush1.msra.mxu0 %v502
    %536 = vmatprep.subr.mxu0 0.0
    %537 = vmatpush1.msra.mxu0 %v503
    %538 = vmatprep.subr.mxu0 0.0
    %539 = vmatpush1.msra.mxu0 %v504
    %540 = vmatprep.subr.mxu0 0.0
    %541 = vmatpush1.msra.mxu0 0.0
    %542 = vmatprep.subr.mxu0 0.0
    %543 = vmatpush1.msra.mxu0 0.0
    %544 = vmatprep.subr.mxu0 0.0
    %545 = vmatpush1.msra.mxu0 0.0
    %546 = vmatprep.subr.mxu0 0.0
    %547 = vmatpush1.msra.mxu0 0.0
    %548 = vmatprep.subr.mxu0 0.0
    %549 = vmatpush1.msra.mxu0 0.0
    %550 = vmatprep.subr.mxu0 0.0
    %551 = vmatpush1.msra.mxu0 0.0
    %552 = vmatprep.subr.mxu0 0.0
    %553 = vmatpush1.msra.mxu0 0.0
    %554 = vmatprep.subr.mxu0 0.0
    %555 = vmatpush1.msra.mxu0 0.0
    %556 = vmatprep.subr.mxu0 0.0
    %557 = vmatpush1.msra.mxu0 0.0
    %558 = vmatprep.subr.mxu0 0.0
    %559 = vmatpush1.msra.mxu0 0.0
    %560 = vmatprep.subr.mxu0 0.0
    %561 = vmatpush1.msra.mxu0 0.0
    %562 = vmatprep.subr.mxu0 0.0
    %563 = vmatpush1.msra.mxu0 0.0
    %564 = vmatprep.subr.mxu0 0.0
    %565 = vmatpush1.msra.mxu0 0.0
    %566 = vmatprep.subr.mxu0 0.0
    %567 = vmatpush1.msra.mxu0 0.0
    %568 = vmatprep.subr.mxu0 0.0
    %569 = vmatpush1.msra.mxu0 0.0
    %570 = vmatprep.subr.mxu0 0.0
    %571 = vmatpush1.msra.mxu0 0.0
    %572 = vmatprep.mubr.f32.mxu0 0.0
    %573 = vmatmul.mubr.f32.gmra.mrb[0].mxu0 %v488
    %v574 = vpop.f32.mrb[0].mxu0
    %v575 = vadd.f32 %v506, %v574
    %v576 = vpop.f32.mrb[0].mxu0
    %577 = vdwg.mxu0
    %vm578 = vcmask 1040384
    %v579 = vsel %vm578, %v575, -inf
    %580 = vmax.xlane.f32.xlu0 %v579
    %v581 = vpop.xlane.xlu0 %580
    %v582 = vsub.f32 %v575, %v581
    %v583 = vmul.f32 %v582, 1.442695
    %v584 = vpow.pop %v583
    %v585 = vld [vmem:[%s1] sm:$0x1]
    %v586 = vsub.f32 1.0, %v585
    %v587 = vmul.f32 %v584, %v586
    %vm588 = vcmask 122880
    %v589 = vsel %vm588, %v587, 0.0
    %590 = vadd.xlane.f32.xlu0 %v589
    %v591 = vpop.xlane.xlu0 %590
    %v592 = vmax.f32 %v591, 1e-12
    %v593 = vrcp.pop %v592
    %v594 = vmul.f32 %v587, %v593
    %595 = vst.msk [vmem:[#allocation8] sm:$0x1] %vm588, %v594
    // Predicated region
    $region38: #{placenet_forward.1} parent=1 // pred_check
      _
    $region39: #{placenet_forward.1} parent=1 // pred_check_branch
      %597 = sbr.rel (0) target = $region41
    $region40: #{placenet_forward.1} parent=1 // pred_region
      %s599 = ssub.s32 16, 16
      %600 = vsyncadd [#allocation4], %s599
      %s602 = sshll.u32 [#allocation8], 4
      %s603 = int_to_ptr.vmem [resolvable:$true] %s602
      %605 = dma.vmem_to_hbm [thread:$0]  %s603, 16, %s6, [#allocation4]
    $region41: #{placenet_forward.1} parent=1 // pred_fallthru
      _
    // Predicated region
    $region42: #{placenet_forward.1} parent=1 // pred_check
      _
    $region43: #{placenet_forward.1} parent=1 // pred_check_branch
      %607 = sbr.rel (0) target = $region45
    $region44: #{placenet_forward.1} parent=1 // pred_region
      %608 = dma.done [#allocation4], 16
    $region45: #{placenet_forward.1} parent=1 // pred_fallthru
      _
    %609 = vsyncpa [#allocation3], 1
    %610 = vsyncpa [#allocation6], 1
    %611 = vsyncpa [#allocation4], 1

</llo_original>
